<compile_context>
chip_gen: v7x
topology: tpu7x:2x2x1
jax: 0.10.0
libtpu: 0.0.40
codegen_flags: <defaults>
</compile_context>

<pallas_src>
import functools
from typing import NamedTuple

import jax
import jax.numpy as jnp
from jax import lax
from jax.experimental import pallas as pl
from jax.experimental.pallas import tpu as pltpu

_LANES = 128

_ARBITRARY = getattr(pltpu, "ARBITRARY", "arbitrary")
_PARALLEL = getattr(pltpu, "PARALLEL", "parallel")
_CORE_PARALLEL = getattr(pltpu, "CORE_PARALLEL", _PARALLEL)


class _Config(NamedTuple):
    num_shards: int      # max shards of the row reduction (2 only on 2-TC chips)
    shard_sem: object    # dimension semantics for the shard axis
    block_budget: int    # target VMEM bytes per input block
    vmem_limit: int      # scoped VMEM limit handed to Mosaic
    native_diff: bool    # chip has a bf16 VPU -> diff in bf16, one upcast


@functools.lru_cache(maxsize=1)
def _chip_config() -> _Config:
    kind = ""
    try:
        dev = jax.devices()[0]
        if getattr(dev, "platform", "") == "tpu":
            kind = str(getattr(dev, "device_kind", "")).lower()
    except Exception:
        pass
    is_v7 = ("v7" in kind) or ("tpu7" in kind)
    is_v6 = "v6" in kind
    is_v5e = ("v5e" in kind) or ("v5 lite" in kind) or ("v5lite" in kind)
    if is_v7:
        # 2 TensorCores / chip, 64 MiB VMEM per core, ~3.2 TB/s HBM.
        return _Config(2, _CORE_PARALLEL, 8 << 20, 48 << 20, True)
    if is_v6 or is_v5e:
        # single TensorCore, 128 MiB VMEM -> larger blocks, no shard axis.
        return _Config(1, _ARBITRARY, 16 << 20, 96 << 20, is_v6)
    # unknown / older generation: conservative limits that fit every chip.
    return _Config(1, _ARBITRARY, 8 << 20, 48 << 20, False)


def _sublanes(itemsize):
    # Sublane multiple for the native dtype packing (f32:8, bf16:16, int8:32).
    return {4: 8, 2: 16, 1: 32}.get(itemsize, 8)


def _squared_diff(x_ref, y_ref, native_diff):
    if native_diff and x_ref.dtype == jnp.bfloat16:
        d = (x_ref[...] - y_ref[...]).astype(jnp.float32)   # 1 convert / element
    else:
        d = x_ref[...].astype(jnp.float32) - y_ref[...].astype(jnp.float32)
    return d * d


def _charbonnier_tiled_kernel(x_ref, y_ref, out_ref, acc_ref, *,
                              tiles_per_shard, total_rows, needs_mask,
                              native_diff):
    """Grid: (shards [CORE_PARALLEL on v7x], batch tiles, row tiles [reduction]).

    x_ref / y_ref : (tile_b, tile_r, 128) blocks of the (B, R, 128) inputs.
    out_ref       : (1, 1, tile_b) per-(shard, batch-tile) partial sums (f32).
    acc_ref       : (tile_b, 128) f32 VMEM accumulator.
    """
    s = pl.program_id(0)
    i = pl.program_id(2)

    @pl.when(i == 0)
    def _():
        acc_ref[...] = jnp.zeros_like(acc_ref)

    sq = _squared_diff(x_ref, y_ref, native_diff)     # (tile_b, tile_r, 128) f32
    tile_r = x_ref.shape[1]

    if needs_mask:
        # Unclamped global row range of this tile; only the tile straddling
        # `total_rows` (and ghost tiles past it) pays the mask ops.
        row0 = (s * tiles_per_shard + i) * tile_r
        is_full = row0 + tile_r <= total_rows

        @pl.when(is_full)
        def _():
            acc_ref[...] += jnp.sum(sq, axis=1)

        @pl.when(jnp.logical_not(is_full))
        def _():
            rows = row0 + lax.broadcasted_iota(jnp.int32, (1, tile_r, 1), 1)
            acc_ref[...] += jnp.sum(jnp.where(rows < total_rows, sq, 0.0), axis=1)
    else:
        acc_ref[...] += jnp.sum(sq, axis=1)

    @pl.when(i == pl.num_programs(2) - 1)
    def _():
        out_ref[...] = jnp.sum(acc_ref[...], axis=1).reshape(1, 1, -1)


def _charbonnier_flat_kernel(x_ref, y_ref, out_ref, *, total_cols, needs_mask,
                             native_diff):
    """Grid: (column tiles [reduction],) over flat (B, N) inputs.

    Used when N % 128 != 0 so the ragged tail is lane-masked in-kernel instead
    of materializing zero-padded copies of X and Y in HBM.
    out_ref : (B, 1) per-batch sums, resident across the whole grid.
    """
    i = pl.program_id(0)

    @pl.when(i == 0)
    def _():
        out_ref[...] = jnp.zeros_like(out_ref)

    sq = _squared_diff(x_ref, y_ref, native_diff)     # (B, tile_n) f32
    tile_n = x_ref.shape[1]

    if needs_mask:
        col0 = i * tile_n
        is_full = col0 + tile_n <= total_cols

        @pl.when(is_full)
        def _():
            out_ref[...] += jnp.sum(sq, axis=1, keepdims=True)

        @pl.when(jnp.logical_not(is_full))
        def _():
            cols = col0 + lax.broadcasted_iota(jnp.int32, (1, tile_n), 1)
            masked = jnp.where(cols < total_cols, sq, 0.0)
            out_ref[...] += jnp.sum(masked, axis=1, keepdims=True)
    else:
        out_ref[...] += jnp.sum(sq, axis=1, keepdims=True)


def _sq_sum_tiled(Xr, Yr, cfg):
    """Per-batch sum((X-Y)^2) for inputs reshaped to (B, R, 128)."""
    B, R, _ = Xr.shape
    itemsize = jnp.dtype(Xr.dtype).itemsize
    sub = _sublanes(itemsize)

    # Cap the batch block so per-block bytes stay bounded for any B; when the
    # batch is split, tile_b is a lane multiple so the (1, 1, tile_b) output
    # block stays legal.
    max_tile_b = max(1, cfg.block_budget // (sub * _LANES * itemsize))
    if B <= max_tile_b:
        tile_b = B
    else:
        tile_b = max(_LANES, (max_tile_b // _LANES) * _LANES)
    b_tiles = pl.cdiv(B, tile_b)

    max_tile_r = max(sub,
                     (cfg.block_budget // (tile_b * _LANES * itemsize)) // sub * sub)
    tile_r = min(R, max_tile_r)
    total_tiles = pl.cdiv(R, tile_r)

    num_shards = cfg.num_shards if total_tiles >= cfg.num_shards else 1
    tiles_per_shard = pl.cdiv(total_tiles, num_shards)
    needs_mask = (num_shards * tiles_per_shard * tile_r) != R

    if needs_mask:
        def in_map(s, b, i):
            # Clamp ghost tiles onto a valid tile; the in-kernel row mask
            # (driven by the *unclamped* index) zeroes their contribution.
            return (b, jnp.minimum(s * tiles_per_shard + i, total_tiles - 1), 0)
    else:
        def in_map(s, b, i):
            return (b, s * tiles_per_shard + i, 0)

    kernel = functools.partial(
        _charbonnier_tiled_kernel,
        tiles_per_shard=tiles_per_shard,
        total_rows=R,
        needs_mask=needs_mask,
        native_diff=cfg.native_diff,
    )

    shard_sem = cfg.shard_sem if num_shards > 1 else _ARBITRARY
    partials = pl.pallas_call(
        kernel,
        out_shape=jax.ShapeDtypeStruct((num_shards, 1, B), jnp.float32),
        grid=(num_shards, b_tiles, tiles_per_shard),
        in_specs=[pl.BlockSpec((tile_b, tile_r, _LANES), in_map),
                  pl.BlockSpec((tile_b, tile_r, _LANES), in_map)],
        out_specs=pl.BlockSpec((1, 1, tile_b), lambda s, b, i: (s, 0, b)),
        scratch_shapes=[pltpu.VMEM((tile_b, _LANES), jnp.float32)],
        compiler_params=pltpu.CompilerParams(
            dimension_semantics=(shard_sem, _ARBITRARY, _ARBITRARY),
            vmem_limit_bytes=cfg.vmem_limit),
    )(Xr, Yr)
    return jnp.sum(partials, axis=(0, 1))                         # (B,) f32


def _sq_sum_flat(Xf, Yf, cfg):
    """Per-batch sum((X-Y)^2) for flat (B, N) inputs with N % 128 != 0."""
    B, N = Xf.shape
    itemsize = jnp.dtype(Xf.dtype).itemsize
    sub = _sublanes(itemsize)
    b_pad = pl.cdiv(B, sub) * sub        # sublane-padded rows as stored in VMEM

    max_tile_n = (cfg.block_budget // (b_pad * itemsize)) // _LANES * _LANES
    if max_tile_n >= N:
        tile_n, num_tiles, needs_mask = N, 1, False     # single full-array block
    elif max_tile_n >= _LANES:
        tile_n = max_tile_n
        num_tiles = pl.cdiv(N, tile_n)
        needs_mask = True                               # ragged tail on this path
    else:
        # Pathological huge batch: even one 128-lane block busts the budget.
        # Fall back to a single zero-pad copy + the batch-tiled dense path.
        # TODO(synk): a batch-tiled flat kernel would avoid this extra HBM pass.
        pad = (-N) % _LANES
        Xp = jnp.pad(Xf, ((0, 0), (0, pad)))
        Yp = jnp.pad(Yf, ((0, 0), (0, pad)))
        R = Xp.shape[1] // _LANES
        return _sq_sum_tiled(Xp.reshape(B, R, _LANES), Yp.reshape(B, R, _LANES), cfg)

    kernel = functools.partial(
        _charbonnier_flat_kernel,
        total_cols=N,
        needs_mask=needs_mask,
        native_diff=cfg.native_diff,
    )
    partials = pl.pallas_call(
        kernel,
        out_shape=jax.ShapeDtypeStruct((B, 1), jnp.float32),
        grid=(num_tiles,),
        in_specs=[pl.BlockSpec((B, tile_n), lambda i: (0, i)),
                  pl.BlockSpec((B, tile_n), lambda i: (0, i))],
        out_specs=pl.BlockSpec((B, 1), lambda i: (0, 0)),
        compiler_params=pltpu.CompilerParams(
            dimension_semantics=(_ARBITRARY,),
            vmem_limit_bytes=cfg.vmem_limit),
    )(Xf, Yf)
    return partials[:, 0]                                          # (B,) f32


def _per_batch_sq_sum(X, Y, cfg):
    B = X.shape[0]
    Xf = X.reshape(B, -1)    # row-major flatten == sum over dims 1..3 semantics
    Yf = Y.reshape(B, -1)
    N = Xf.shape[1]
    if N % _LANES == 0:
        Xr = Xf.reshape(B, N // _LANES, _LANES)
        Yr = Yf.reshape(B, N // _LANES, _LANES)
        try:
            return _sq_sum_tiled(Xr, Yr, cfg)
        except Exception:
            # e.g. CORE_PARALLEL rejected by this jax/libtpu combo: retry with
            # the conservative single-shard configuration.
            if cfg.num_shards == 1:
                raise
            return _sq_sum_tiled(
                Xr, Yr, cfg._replace(num_shards=1, shard_sem=_ARBITRARY))
    return _sq_sum_flat(Xf, Yf, cfg)


def _charbonnier_loss_with_cfg(X, Y, epsilon, cfg):
    eps = jnp.float32(float(epsilon) ** 2)
    B = X.shape[0]
    per_batch = _per_batch_sq_sum(X, Y, cfg) + eps      # (B,) f32
    return jnp.sum(jnp.sqrt(per_batch)) / B


def charbonnier_loss(X, Y, epsilon=0.001):
    """Pallas implementation of Charbonnier_loss(epsilon).forward(X, Y)."""
    return _charbonnier_loss_with_cfg(X, Y, epsilon, _chip_config())


def charbonnier_loss_ref(X, Y, epsilon=0.001):
    eps = float(epsilon) ** 2
    B = X.shape[0]
    sq = (X.astype(jnp.float32) - Y.astype(jnp.float32)) ** 2
    per_batch = jnp.sum(sq.reshape(B, -1), axis=1) + eps
    return jnp.sum(jnp.sqrt(per_batch)) / B


if __name__ == "__main__":
    key = jax.random.PRNGKey(0)
    kx, ky = jax.random.split(key)

    # Headline small case: (B, C, H, W) image-restoration loss shapes.
    X = jax.random.normal(kx, (2, 4, 16, 16), dtype=jnp.float32)
    Y = jax.random.normal(ky, (2, 4, 16, 16), dtype=jnp.float32)
    loss = jax.block_until_ready(charbonnier_loss(X, Y))
    ref = charbonnier_loss_ref(X, Y)
    assert jnp.allclose(loss, ref, rtol=1e-5, atol=1e-5), (loss, ref)

    # Multi-tile reduction + ragged-row mask path (forced tiny block budget).
    cfg_small = _chip_config()._replace(block_budget=16 * 1024)
    X2 = jax.random.normal(kx, (2, 3, 32, 32), dtype=jnp.float32)
    Y2 = jax.random.normal(ky, (2, 3, 32, 32), dtype=jnp.float32)
    l2 = jax.block_until_ready(_charbonnier_loss_with_cfg(X2, Y2, 0.001, cfg_small))
    r2 = charbonnier_loss_ref(X2, Y2)
    assert jnp.allclose(l2, r2, rtol=1e-5, atol=1e-5), (l2, r2)

    # 128-unaligned inner size: flat lane-masked path (no jnp.pad HBM pass).
    X3 = jax.random.normal(kx, (2, 3, 15, 15), dtype=jnp.float32)
    Y3 = jax.random.normal(ky, (2, 3, 15, 15), dtype=jnp.float32)
    l3 = jax.block_until_ready(_charbonnier_loss_with_cfg(X3, Y3, 0.001, cfg_small))
    r3 = charbonnier_loss_ref(X3, Y3)
    assert jnp.allclose(l3, r3, rtol=1e-5, atol=1e-5), (l3, r3)

    # bf16 inputs (exercises the native-dtype diff on v6e/v7x).
    Xb, Yb = X.astype(jnp.bfloat16), Y.astype(jnp.bfloat16)
    lb = jax.block_until_ready(charbonnier_loss(Xb, Yb))
    rb = charbonnier_loss_ref(Xb, Yb)
    assert jnp.allclose(lb, rb, rtol=1e-2, atol=1e-2), (lb, rb)

    print("KERNEL_OK")
</pallas_src>

<mosaic_0001>
module attributes {stable_mosaic.version = 11 : i64} {
  func.func @_charbonnier_tiled_kernel(%arg0: i32, %arg1: i32, %arg2: i32, %arg3: memref<2x8x128xf32, #tpu.memory_space<vmem>>, %arg4: memref<2x8x128xf32, #tpu.memory_space<vmem>>, %arg5: memref<1x1x2xf32, #tpu.memory_space<vmem>>, %arg6: memref<2x128xf32, #tpu.memory_space<vmem>>) attributes {dimension_semantics = [#tpu.dimension_semantics<arbitrary>, #tpu.dimension_semantics<arbitrary>, #tpu.dimension_semantics<arbitrary>], iteration_bounds = array<i64: 1, 1, 1>, scalar_prefetch = 0 : i64, scratch_operands = 1 : i64, tpu.core_type = #tpu.core_type<tc>, window_params = [{transform_indices = @transform_0, window_bounds = array<i64: 2, 8, 128>}, {transform_indices = @transform_1, window_bounds = array<i64: 2, 8, 128>}, {transform_indices = @transform_2, window_bounds = array<i64: 1, 1, 2>}]} {
    %c0_i32 = arith.constant 0 : i32
    %0 = arith.cmpi eq, %arg2, %c0_i32 : i32
    %1 = arith.extui %0 : i1 to i32
    %c0_i32_0 = arith.constant 0 : i32
    %2 = arith.cmpi ne, %1, %c0_i32_0 : i32
    scf.if %2 {
      %cst_12 = arith.constant 0.000000e+00 : f32
      %14 = vector.broadcast %cst_12 : f32 to vector<2x128xf32>
      %c0_13 = arith.constant 0 : index
      %c0_14 = arith.constant 0 : index
      %15 = vector.load %arg6[%c0_13, %c0_14] : memref<2x128xf32, #tpu.memory_space<vmem>>, vector<2x128xf32>
      tpu.vector_store %arg6[%c0_13, %c0_14], %14 {strides = array<i32>} : memref<2x128xf32, #tpu.memory_space<vmem>>, vector<2x128xf32>,
    } else {
    }
    %c0 = arith.constant 0 : index
    %c0_1 = arith.constant 0 : index
    %c0_2 = arith.constant 0 : index
    %3 = vector.load %arg3[%c0, %c0_1, %c0_2] : memref<2x8x128xf32, #tpu.memory_space<vmem>>, vector<2x8x128xf32>
    %c0_3 = arith.constant 0 : index
    %c0_4 = arith.constant 0 : index
    %c0_5 = arith.constant 0 : index
    %4 = vector.load %arg4[%c0_3, %c0_4, %c0_5] : memref<2x8x128xf32, #tpu.memory_space<vmem>>, vector<2x8x128xf32>
    %5 = arith.subf %3, %4 : vector<2x8x128xf32>
    %6 = arith.mulf %5, %5 : vector<2x8x128xf32>
    %c0_6 = arith.constant 0 : index
    %c0_7 = arith.constant 0 : index
    %7 = vector.load %arg6[%c0_6, %c0_7] : memref<2x128xf32, #tpu.memory_space<vmem>>, vector<2x128xf32>
    %cst = arith.constant dense<0.000000e+00> : vector<2x128xf32>
    %8 = vector.multi_reduction <add>, %6, %cst [1] : vector<2x8x128xf32> to vector<2x128xf32>
    %9 = arith.addf %7, %8 : vector<2x128xf32>
    %c0_8 = arith.constant 0 : index
    %c0_9 = arith.constant 0 : index
    %10 = vector.load %arg6[%c0_8, %c0_9] : memref<2x128xf32, #tpu.memory_space<vmem>>, vector<2x128xf32>
    tpu.vector_store %arg6[%c0_8, %c0_9], %9 {strides = array<i32>} : memref<2x128xf32, #tpu.memory_space<vmem>>, vector<2x128xf32>,
    %c0_i32_10 = arith.constant 0 : i32
    %11 = arith.cmpi eq, %arg2, %c0_i32_10 : i32
    %12 = arith.extui %11 : i1 to i32
    %c0_i32_11 = arith.constant 0 : i32
    %13 = arith.cmpi ne, %12, %c0_i32_11 : i32
    scf.if %13 {
      %c0_12 = arith.constant 0 : index
      %c0_13 = arith.constant 0 : index
      %14 = vector.load %arg6[%c0_12, %c0_13] : memref<2x128xf32, #tpu.memory_space<vmem>>, vector<2x128xf32>
      %cst_14 = arith.constant dense<0.000000e+00> : vector<2xf32>
      %15 = vector.multi_reduction <add>, %14, %cst_14 [1] : vector<2x128xf32> to vector<2xf32>
      %16 = vector.shape_cast %15 : vector<2xf32> to vector<1x1x2xf32>
      %c0_15 = arith.constant 0 : index
      %c0_16 = arith.constant 0 : index
      %c0_17 = arith.constant 0 : index
      %17 = vector.load %arg5[%c0_15, %c0_16, %c0_17] : memref<1x1x2xf32, #tpu.memory_space<vmem>>, vector<1x1x2xf32>
      tpu.vector_store %arg5[%c0_15, %c0_16, %c0_17], %16 {strides = array<i32>} : memref<1x1x2xf32, #tpu.memory_space<vmem>>, vector<1x1x2xf32>,
    } else {
    }
    return
  }
  func.func @transform_0(%arg0: i32, %arg1: i32, %arg2: i32) -> (i32, i32, i32) {
    %c1_i32 = arith.constant 1 : i32
    %0 = arith.muli %arg0, %c1_i32 : i32
    %1 = arith.addi %0, %arg2 : i32
    %c0_i32 = arith.constant 0 : i32
    %c0_i32_0 = arith.constant 0 : i32
    return %arg1, %1, %c0_i32 : i32, i32, i32
  }
  func.func @transform_1(%arg0: i32, %arg1: i32, %arg2: i32) -> (i32, i32, i32) {
    %c1_i32 = arith.constant 1 : i32
    %0 = arith.muli %arg0, %c1_i32 : i32
    %1 = arith.addi %0, %arg2 : i32
    %c0_i32 = arith.constant 0 : i32
    %c0_i32_0 = arith.constant 0 : i32
    return %arg1, %1, %c0_i32 : i32, i32, i32
  }
  func.func @transform_2(%arg0: i32, %arg1: i32, %arg2: i32) -> (i32, i32, i32) {
    %c0_i32 = arith.constant 0 : i32
    %c0_i32_0 = arith.constant 0 : i32
    return %arg0, %c0_i32, %arg1 : i32, i32, i32
  }
}

</mosaic_0001>

<llo_original>
// kernel: tpu_custom_call.1
$region0: #{tpu_custom_call.1}
  #allocation0 [shape = 'u32[]', space=smem, size = 0x4, offset = 0x4, fixed_abs, tag = 'smem constant byte address 0x4 - core index']
  #allocation1 [shape = 'u32[144,128]{1,0:T(1,128)}', space=vmem, size = 0x12000, scoped, tag = 'internal scratch']
  #allocation2 [shape = 'f32[2,128]{1,0:T(2,128)}', space=vmem, size = 0x400, scoped, tag = 'scratch operand']
  %s0 = inlined_call_operand.hbm [shape: f32[2,8,128], index: 0, kind: input, shape index: {}]
  %s1 = inlined_call_operand.hbm [shape: f32[2,8,128], index: 1, kind: input, shape index: {}]
  %s2 = inlined_call_operand.hbm [shape: f32[1,1,2], index: 2, kind: output, shape index: {}]
  %s3 = sld [smem:[#allocation0]]
  $region34: #{tpu_custom_call.1} parent=0
    _
  %s5 = ssub.s32 1, %s3
  %s6 = scalar_select 0, %s5, %s3
  $region1: #{tpu_custom_call.1} parent=0
    #allocation3 [shape = 'u8[8192]{0}', space=vmem, size = 0x2000, scoped, tag = 'input window, operand 0, single buffered']
    #allocation4 [shape = 's32[1]{0}', space=sflag, size = 0x4, scoped, tag = 'scoped memory for tpu_custom_call.1']
    #allocation5 [shape = 's32[1]{0}', space=sflag, size = 0x4, scoped, tag = 'scoped memory for tpu_custom_call.1']
    #allocation6 [shape = 'u8[8192]{0}', space=vmem, size = 0x2000, scoped, tag = 'input window, operand 1, single buffered']
    #allocation7 [shape = 's32[1]{0}', space=sflag, size = 0x4, scoped, tag = 'scoped memory for tpu_custom_call.1']
    #allocation8 [shape = 'u8[512]{0}', space=vmem, size = 0x400, scoped, tag = 'output window, operand 0, single buffered']
    %7 = vsyncpa [#allocation4], 0
    %8 = vsyncpa [#allocation7], 0
    %9 = vsyncpa [#allocation5], 0
    // Predicated region
    $region2: #{tpu_custom_call.1} parent=1 // pred_check
      _
    $region3: #{tpu_custom_call.1} parent=1 // pred_check_branch
      %11 = sbr.rel (0) target = $region5
    $region4: #{tpu_custom_call.1} parent=1 // pred_region
      %s12 = sadd.s32 0, 0
      %s14 = ssub.s32 256, 256
      %15 = vsyncadd [#allocation4], %s14
      %s16 = smul.addr %s12, 128
      %s17 = scalar_lea.hbm %s0, %s16
      %s18 = sshll.u32 [#allocation3], 4
      %s19 = int_to_ptr.vmem [resolvable:$true] %s18
      %24 = dma.hbm_to_vmem [thread:$0]  %s17, 256, %s19, [#allocation4], 128, 128, 8
    $region5: #{tpu_custom_call.1} parent=1 // pred_fallthru
      _
    // Predicated region
    $region6: #{tpu_custom_call.1} parent=1 // pred_check
      _
    $region7: #{tpu_custom_call.1} parent=1 // pred_check_branch
      %26 = sbr.rel (0) target = $region9
    $region8: #{tpu_custom_call.1} parent=1 // pred_region
      %s27 = sadd.s32 0, 0
      %s29 = ssub.s32 256, 256
      %30 = vsyncadd [#allocation7], %s29
      %s31 = smul.addr %s27, 128
      %s32 = scalar_lea.hbm %s1, %s31
      %s33 = sshll.u32 [#allocation6], 4
      %s34 = int_to_ptr.vmem [resolvable:$true] %s33
      %39 = dma.hbm_to_vmem [thread:$0]  %s32, 256, %s34, [#allocation7], 128, 128, 8
    $region9: #{tpu_custom_call.1} parent=1 // pred_fallthru
      _
    // Predicated region
    $region10: #{tpu_custom_call.1} parent=1 // pred_check
      _
    $region11: #{tpu_custom_call.1} parent=1 // pred_check_branch
      %41 = sbr.rel (0) target = $region13
    $region12: #{tpu_custom_call.1} parent=1 // pred_region
      %42 = dma.done [#allocation4], 256
    $region13: #{tpu_custom_call.1} parent=1 // pred_fallthru
      _
    // Predicated region
    $region14: #{tpu_custom_call.1} parent=1 // pred_check
      _
    $region15: #{tpu_custom_call.1} parent=1 // pred_check_branch
      %44 = sbr.rel (0) target = $region17
    $region16: #{tpu_custom_call.1} parent=1 // pred_region
      %45 = dma.done [#allocation7], 256
    $region17: #{tpu_custom_call.1} parent=1 // pred_fallthru
      _
    %s46 = sadd.s32 0, 0
    %s47 = sadd.s32 0, 0
    %p48 = scmp.eq.s32.totalorder 0, 0
    // Predicated region
    $region18: #{tpu_custom_call.1} parent=1 // pred_check
      %p49 = pneg %p48
    $region19: #{tpu_custom_call.1} parent=1 // pred_check_branch
      %51 = sbr.rel (%p49) target = $region21
    $region20: #{tpu_custom_call.1} parent=1 // pred_region
      %52 = vst [vmem:[#allocation2] sm:$0x3] 0.0
    $region21: #{tpu_custom_call.1} parent=1 // pred_fallthru
      _
    %v53 = vld [vmem:[#allocation3] sm:$0xff]
    %v54 = vld [vmem:[#allocation3 + $0x8] sm:$0xff]
    %v55 = vld [vmem:[#allocation6] sm:$0xff]
    %v56 = vld [vmem:[#allocation6 + $0x8] sm:$0xff]
    %v57 = vsub.f32 %v53, %v55
    %v58 = vsub.f32 %v54, %v56
    %v59 = vmul.f32 %v57, %v57
    %v60 = vmul.f32 %v58, %v58
    %v61 = vld [vmem:[#allocation2] sm:$0x3]
    %v62 = vrot.slane %v59, 4
    %v63 = vadd.f32 %v59, %v62
    %v64 = vrot.slane %v63, 2
    %v65 = vadd.f32 %v63, %v64
    %v66 = vrot.slane %v65, 1
    %v67 = vadd.f32 %v65, %v66
    %v68 = vrot.slane %v60, 4
    %v69 = vadd.f32 %v60, %v68
    %v70 = vrot.slane %v69, 2
    %v71 = vadd.f32 %v69, %v70
    %v72 = vrot.slane %v71, 1
    %v73 = vadd.f32 %v71, %v72
    %vm76 = vcmask 1041409
    %v77 = vsel %vm76, %v73, %v67
    %v79 = vadd.f32 %v61, %v77
    %80 = vst [vmem:[#allocation2] sm:$0x3] %v79
    // Predicated region
    $region22: #{tpu_custom_call.1} parent=1 // pred_check
      %p81 = pneg %p48
    $region23: #{tpu_custom_call.1} parent=1 // pred_check_branch
      %83 = sbr.rel (%p81) target = $region25
    $region24: #{tpu_custom_call.1} parent=1 // pred_region
      %v84 = vld [vmem:[#allocation2] sm:$0x3]
      %vm85 = vcmask 1041408
      %v86 = vsel %vm85, %v84, 0.0
      %87 = vadd.xlane.f32.xlu0 %v86
      %v88 = vpop.xlane.xlu0 %87
      %v90 = vlaneseq
      %v91 = vand.u32 %v90, 127
      %v92 = vlaneseq
      %v93 = vshrl.u32 %v92, 7
      %v94 = vsub.s32 %v91, %v93
      %v95 = vrot.slane %v88, %v94
      %vm97 = vcmask 8192
      %98 = vst.msk [vmem:[#allocation8] sm:$0x1] %vm97, %v95
    $region25: #{tpu_custom_call.1} parent=1 // pred_fallthru
      _
    // Predicated region
    $region26: #{tpu_custom_call.1} parent=1 // pred_check
      _
    $region27: #{tpu_custom_call.1} parent=1 // pred_check_branch
      %100 = sbr.rel (0) target = $region29
    $region28: #{tpu_custom_call.1} parent=1 // pred_region
      %s102 = ssub.s32 16, 16
      %103 = vsyncadd [#allocation5], %s102
      %s105 = sshll.u32 [#allocation8], 4
      %s106 = int_to_ptr.vmem [resolvable:$true] %s105
      %108 = dma.vmem_to_hbm [thread:$0]  %s106, 16, %s2, [#allocation5]
    $region29: #{tpu_custom_call.1} parent=1 // pred_fallthru
      _
    // Predicated region
    $region30: #{tpu_custom_call.1} parent=1 // pred_check
      _
    $region31: #{tpu_custom_call.1} parent=1 // pred_check_branch
      %110 = sbr.rel (0) target = $region33
    $region32: #{tpu_custom_call.1} parent=1 // pred_region
      %111 = dma.done [#allocation5], 16
    $region33: #{tpu_custom_call.1} parent=1 // pred_fallthru
      _
    %112 = vsyncpa [#allocation4], 1
    %113 = vsyncpa [#allocation7], 1
    %114 = vsyncpa [#allocation5], 1

</llo_original>
